<compile_context>
chip_gen: v7x
topology: tpu7x:2x2x1
jax: 0.10.0
libtpu: 0.0.40
codegen_flags: <defaults>
</compile_context>

<pallas_src>
import jax
import jax.numpy as jnp
from jax.experimental import pallas as pl
from jax.experimental.pallas import tpu as pltpu

LANE = 128


def _round_up(v, m):
    return (v + m - 1) // m * m


# ---------------------------------------------------------------------------
# Kernel
# ---------------------------------------------------------------------------
def make_mlp_kernel(num_layers, separate_bn, n_valid_out):
    """Fused MLP kernel over one (TILE_N, C) row tile.

    separate_bn=True  -> per hidden layer params are [W, b, bn_scale, bn_shift]
                         (relu_first=True: relu then BN as one FMA).
    separate_bn=False -> per hidden layer params are [W, b]
                         (no BN, or BN already folded into W/b when relu_first=False).
    """
    per_hidden = 4 if separate_bn else 2

    def kernel(*refs):
        x_ref = refs[0]
        out_ref = refs[-1]
        params = refs[1:-1]

        h = x_ref[...]                                   # (TILE_N, Cin_p) bf16
        idx = 0
        for _ in range(num_layers - 1):
            w = params[idx][...]                         # bf16 (din_p, dout_p)
            b = params[idx + 1][...]                     # f32  (1, dout_p)
            z = jnp.dot(h, w, preferred_element_type=jnp.float32) + b
            z = jnp.maximum(z, 0.0)                      # ReLU (BN folded if relu_first=False)
            if separate_bn:                              # relu_first=True: BN after ReLU
                z = z * params[idx + 2][...] + params[idx + 3][...]
            # TODO(synk): dropout omitted (inference semantics); training-mode dropout
            # would use pltpu.prng_seed / pltpu.prng_random_bits here.
            h = z.astype(jnp.bfloat16)
            idx += per_hidden

        w = params[idx][...]
        b = params[idx + 1][...]
        logits = jnp.dot(h, w, preferred_element_type=jnp.float32) + b

        # log_softmax over the valid (un-padded) output lanes only.
        lane = jax.lax.broadcasted_iota(jnp.int32, logits.shape, 1)
        valid = lane < n_valid_out
        lm = jnp.where(valid, logits, -1e30)
        m = jnp.max(lm, axis=-1, keepdims=True)
        sh = lm - m
        lse = jnp.log(jnp.sum(jnp.exp(sh), axis=-1, keepdims=True))
        out_ref[...] = (sh - lse).astype(out_ref.dtype)

    return kernel


# ---------------------------------------------------------------------------
# Wrapper: padding, tiling, pallas_call
# ---------------------------------------------------------------------------
def mlp_forward_pallas(x, prepped, *, num_layers, separate_bn,
                       in_channels, out_channels, cin_p, cout_p, tile_n=256):
    N = x.shape[0]
    tn = _round_up(max(N, 8), 8) if N <= tile_n else tile_n
    n_pad = _round_up(N, tn)

    xp = jnp.zeros((n_pad, cin_p), jnp.bfloat16)
    xp = xp.at[:N, :in_channels].set(x.astype(jnp.bfloat16))

    grid = (n_pad // tn,)
    in_specs = [pl.BlockSpec((tn, cin_p), lambda i: (i, 0))]
    for p in prepped:
        # Constant block index -> weights/biases stay VMEM-resident across grid steps.
        in_specs.append(pl.BlockSpec(p.shape, lambda i: (0, 0)))
    out_spec = pl.BlockSpec((tn, cout_p), lambda i: (i, 0))

    # VMEM budget: double-buffered blocks + activation headroom; clamp at 64 MiB (v7x).
    block_bytes = (tn * cin_p * 2 + tn * cout_p * 4
                   + sum(int(p.size) * p.dtype.itemsize for p in prepped))
    max_dim = max(cin_p, cout_p, max(p.shape[-1] for p in prepped))
    act_bytes = 4 * tn * max_dim * 4
    vmem_limit = int(min(64 * 1024 * 1024,
                         max(8 * 1024 * 1024, 2 * block_bytes + act_bytes + (2 << 20))))

    kernel = make_mlp_kernel(num_layers, separate_bn, out_channels)
    out_p = pl.pallas_call(
        kernel,
        out_shape=jax.ShapeDtypeStruct((n_pad, cout_p), jnp.float32),
        grid=grid,
        in_specs=in_specs,
        out_specs=out_spec,
        compiler_params=pltpu.CompilerParams(
            dimension_semantics=("parallel",),
            vmem_limit_bytes=vmem_limit),
    )(xp, *prepped)
    return out_p[:N, :out_channels]


# ---------------------------------------------------------------------------
# Parameter construction / preparation
# ---------------------------------------------------------------------------
def init_params(key, in_channels, hidden_channels, out_channels, num_layers, batch_norm):
    """Deterministic synthetic parameters. Linear weights stored as (in, out), f32."""
    dims = [in_channels] + [hidden_channels] * (num_layers - 1) + [out_channels]
    params = []
    for li in range(num_layers):
        d_in, d_out = dims[li], dims[li + 1]
        key, kw, kb = jax.random.split(key, 3)
        scale = 1.0 / jnp.sqrt(jnp.float32(d_in))
        params.append(jax.random.uniform(kw, (d_in, d_out), jnp.float32, -scale, scale))
        params.append(jax.random.uniform(kb, (1, d_out), jnp.float32, -scale, scale))
        if batch_norm and li < num_layers - 1:
            key, kg, kbe, krm, krv = jax.random.split(key, 5)
            params.append(1.0 + 0.1 * jax.random.normal(kg, (1, d_out), jnp.float32))
            params.append(0.1 * jax.random.normal(kbe, (1, d_out), jnp.float32))
            params.append(0.1 * jax.random.normal(krm, (1, d_out), jnp.float32))
            params.append(1.0 + 0.1 * jax.random.uniform(krv, (1, d_out), jnp.float32))
    return params


def prepare_params(raw_params, *, num_layers, relu_first, batch_norm, dims, dims_p, eps=1e-5):
    """Pad to 128-lane multiples, bf16 weights, precompute/fold BN affine."""
    per_hidden_raw = 6 if batch_norm else 2
    separate_bn = batch_norm and relu_first
    prepped = []
    idx = 0
    for li in range(num_layers):
        d_in, d_out = dims[li], dims[li + 1]
        p_in, p_out = dims_p[li], dims_p[li + 1]
        w = raw_params[idx]
        b = raw_params[idx + 1]
        is_hidden = li < num_layers - 1
        scale = shift = None
        if is_hidden and batch_norm:
            g, be, rm, rv = raw_params[idx + 2:idx + 6]
            scale = g * jax.lax.rsqrt(rv + eps)
            shift = be - rm * scale
            if not relu_first:
                # BN immediately follows the Linear -> fold into W and b.
                w = w * scale
                b = b * scale + shift
        wp = jnp.zeros((p_in, p_out), jnp.float32).at[:d_in, :d_out].set(w).astype(jnp.bfloat16)
        bp = jnp.zeros((1, p_out), jnp.float32).at[:, :d_out].set(b)
        prepped += [wp, bp]
        if is_hidden and separate_bn:
            prepped.append(jnp.zeros((1, p_out), jnp.float32).at[:, :d_out].set(scale))
            prepped.append(jnp.zeros((1, p_out), jnp.float32).at[:, :d_out].set(shift))
        idx += per_hidden_raw if is_hidden else 2
    return prepped


# ---------------------------------------------------------------------------
# References
# ---------------------------------------------------------------------------
def mlp_forward_ref_prepped(x, prepped, *, num_layers, separate_bn,
                            in_channels, out_channels, cin_p):
    """Pure-JAX reference mirroring the kernel's numerics (padded, bf16 matmuls)."""
    N = x.shape[0]
    h = jnp.zeros((N, cin_p), jnp.bfloat16).at[:, :in_channels].set(x.astype(jnp.bfloat16))
    per_hidden = 4 if separate_bn else 2
    idx = 0
    for _ in range(num_layers - 1):
        w, b = prepped[idx], prepped[idx + 1]
        z = jnp.dot(h, w, preferred_element_type=jnp.float32) + b
        z = jnp.maximum(z, 0.0)
        if separate_bn:
            z = z * prepped[idx + 2] + prepped[idx + 3]
        h = z.astype(jnp.bfloat16)
        idx += per_hidden
    w, b = prepped[idx], prepped[idx + 1]
    logits = (jnp.dot(h, w, preferred_element_type=jnp.float32) + b)[:, :out_channels]
    return jax.nn.log_softmax(logits, axis=-1)


def mlp_forward_ref_raw(x, raw_params, *, num_layers, relu_first, batch_norm, eps=1e-5):
    """Pure-f32 reference of the original PyTorch eval-mode semantics."""
    per_hidden = 6 if batch_norm else 2
    h = x.astype(jnp.float32)
    idx = 0
    for _ in range(num_layers - 1):
        w, b = raw_params[idx], raw_params[idx + 1]
        h = h @ w + b
        if relu_first:
            h = jnp.maximum(h, 0.0)
        if batch_norm:
            g, be, rm, rv = raw_params[idx + 2:idx + 6]
            h = (h - rm) / jnp.sqrt(rv + eps) * g + be
        if not relu_first:
            h = jnp.maximum(h, 0.0)
        idx += per_hidden
    w, b = raw_params[idx], raw_params[idx + 1]
    return jax.nn.log_softmax(h @ w + b, axis=-1)


# ---------------------------------------------------------------------------
# Demo / validation
# ---------------------------------------------------------------------------
def run_case(seed, *, in_c, hid, out_c, num_layers, relu_first, batch_norm, N, tile_n=256):
    key = jax.random.PRNGKey(seed)
    key, kx = jax.random.split(key)
    x = jax.random.normal(kx, (N, in_c), jnp.float32)
    raw = init_params(key, in_c, hid, out_c, num_layers, batch_norm)

    dims = [in_c] + [hid] * (num_layers - 1) + [out_c]
    dims_p = [_round_up(d, LANE) for d in dims]
    separate_bn = batch_norm and relu_first
    prepped = prepare_params(raw, num_layers=num_layers, relu_first=relu_first,
                             batch_norm=batch_norm, dims=dims, dims_p=dims_p)

    out = mlp_forward_pallas(x, prepped, num_layers=num_layers, separate_bn=separate_bn,
                             in_channels=in_c, out_channels=out_c,
                             cin_p=dims_p[0], cout_p=dims_p[-1], tile_n=tile_n)
    out = jax.block_until_ready(out)
    assert out.shape == (N, out_c)

    # Tight check: reference with identical padded/bf16 numerics.
    ref_t = jax.block_until_ready(
        mlp_forward_ref_prepped(x, prepped, num_layers=num_layers, separate_bn=separate_bn,
                                in_channels=in_c, out_channels=out_c, cin_p=dims_p[0]))
    if not jnp.allclose(out, ref_t, atol=2e-3, rtol=2e-3):
        raise AssertionError("Pallas MLP mismatch vs bf16-mirrored reference")

    # Loose check: original f32 eval-mode semantics (catches structural bugs).
    ref_r = jax.block_until_ready(
        mlp_forward_ref_raw(x, raw, num_layers=num_layers,
                            relu_first=relu_first, batch_norm=batch_norm))
    if not jnp.allclose(out, ref_r, atol=5e-2, rtol=5e-2):
        raise AssertionError("Pallas MLP mismatch vs f32 reference semantics")


if __name__ == "__main__":
    # Small config consistent with MLP(in, hidden, out, num_layers, dropout,
    #                                   relu_first, batch_norm); single row tile.
    run_case(0, in_c=16, hid=32, out_c=8, num_layers=3,
             relu_first=True, batch_norm=True, N=16)
    # Second config: BN folded into Linear (relu_first=False) and a multi-tile
    # row grid (N=300 -> padded to 512 rows, grid=(2,), 256-row tiles).
    run_case(0, in_c=16, hid=32, out_c=8, num_layers=3,
             relu_first=False, batch_norm=True, N=300, tile_n=256)
    print("KERNEL_OK")
</pallas_src>

<mosaic_0001>
module attributes {stable_mosaic.version = 11 : i64} {
  func.func @kernel(%arg0: i32, %arg1: memref<16x128xbf16, #tpu.memory_space<vmem>>, %arg2: memref<128x128xbf16, #tpu.memory_space<vmem>>, %arg3: memref<1x128xf32, #tpu.memory_space<vmem>>, %arg4: memref<1x128xf32, #tpu.memory_space<vmem>>, %arg5: memref<1x128xf32, #tpu.memory_space<vmem>>, %arg6: memref<128x128xbf16, #tpu.memory_space<vmem>>, %arg7: memref<1x128xf32, #tpu.memory_space<vmem>>, %arg8: memref<1x128xf32, #tpu.memory_space<vmem>>, %arg9: memref<1x128xf32, #tpu.memory_space<vmem>>, %arg10: memref<128x128xbf16, #tpu.memory_space<vmem>>, %arg11: memref<1x128xf32, #tpu.memory_space<vmem>>, %arg12: memref<16x128xf32, #tpu.memory_space<vmem>>) attributes {dimension_semantics = [#tpu.dimension_semantics<parallel>], iteration_bounds = array<i64: 1>, scalar_prefetch = 0 : i64, scratch_operands = 0 : i64, tpu.core_type = #tpu.core_type<tc>, window_params = [{transform_indices = @transform_0, window_bounds = array<i64: 16, 128>}, {pipeline_mode = #tpu.pipeline_mode<synchronous>, transform_indices = @transform_1, window_bounds = array<i64: 128, 128>}, {pipeline_mode = #tpu.pipeline_mode<synchronous>, transform_indices = @transform_2, window_bounds = array<i64: 1, 128>}, {pipeline_mode = #tpu.pipeline_mode<synchronous>, transform_indices = @transform_3, window_bounds = array<i64: 1, 128>}, {pipeline_mode = #tpu.pipeline_mode<synchronous>, transform_indices = @transform_4, window_bounds = array<i64: 1, 128>}, {pipeline_mode = #tpu.pipeline_mode<synchronous>, transform_indices = @transform_5, window_bounds = array<i64: 128, 128>}, {pipeline_mode = #tpu.pipeline_mode<synchronous>, transform_indices = @transform_6, window_bounds = array<i64: 1, 128>}, {pipeline_mode = #tpu.pipeline_mode<synchronous>, transform_indices = @transform_7, window_bounds = array<i64: 1, 128>}, {pipeline_mode = #tpu.pipeline_mode<synchronous>, transform_indices = @transform_8, window_bounds = array<i64: 1, 128>}, {pipeline_mode = #tpu.pipeline_mode<synchronous>, transform_indices = @transform_9, window_bounds = array<i64: 128, 128>}, {pipeline_mode = #tpu.pipeline_mode<synchronous>, transform_indices = @transform_10, window_bounds = array<i64: 1, 128>}, {transform_indices = @transform_11, window_bounds = array<i64: 16, 128>}]} {
    %c0 = arith.constant 0 : index
    %c0_0 = arith.constant 0 : index
    %0 = vector.load %arg1[%c0, %c0_0] : memref<16x128xbf16, #tpu.memory_space<vmem>>, vector<16x128xbf16>
    %c0_1 = arith.constant 0 : index
    %c0_2 = arith.constant 0 : index
    %1 = vector.load %arg2[%c0_1, %c0_2] : memref<128x128xbf16, #tpu.memory_space<vmem>>, vector<128x128xbf16>
    %c0_3 = arith.constant 0 : index
    %c0_4 = arith.constant 0 : index
    %2 = vector.load %arg3[%c0_3, %c0_4] : memref<1x128xf32, #tpu.memory_space<vmem>>, vector<1x128xf32>
    %cst = arith.constant dense<0.000000e+00> : vector<16x128xf32>
    %3 = tpu.matmul %0, %1, %cst {dimension_numbers = #tpu.dot_dimension_numbers<[1], [0], [0], [1], [0, 0, 1, 1], [], []>} : vector<16x128xbf16>, vector<128x128xbf16>, vector<16x128xf32> -> vector<16x128xf32>
    %4 = vector.broadcast %2 : vector<1x128xf32> to vector<16x128xf32>
    %5 = arith.addf %3, %4 : vector<16x128xf32>
    %cst_5 = arith.constant 0.000000e+00 : f32
    %6 = vector.broadcast %cst_5 : f32 to vector<16x128xf32>
    %7 = arith.maximumf %5, %6 : vector<16x128xf32>
    %c0_6 = arith.constant 0 : index
    %c0_7 = arith.constant 0 : index
    %8 = vector.load %arg4[%c0_6, %c0_7] : memref<1x128xf32, #tpu.memory_space<vmem>>, vector<1x128xf32>
    %9 = vector.broadcast %8 : vector<1x128xf32> to vector<16x128xf32>
    %10 = arith.mulf %7, %9 : vector<16x128xf32>
    %c0_8 = arith.constant 0 : index
    %c0_9 = arith.constant 0 : index
    %11 = vector.load %arg5[%c0_8, %c0_9] : memref<1x128xf32, #tpu.memory_space<vmem>>, vector<1x128xf32>
    %12 = vector.broadcast %11 : vector<1x128xf32> to vector<16x128xf32>
    %13 = arith.addf %10, %12 : vector<16x128xf32>
    %14 = arith.truncf %13 : vector<16x128xf32> to vector<16x128xbf16>
    %c0_10 = arith.constant 0 : index
    %c0_11 = arith.constant 0 : index
    %15 = vector.load %arg6[%c0_10, %c0_11] : memref<128x128xbf16, #tpu.memory_space<vmem>>, vector<128x128xbf16>
    %c0_12 = arith.constant 0 : index
    %c0_13 = arith.constant 0 : index
    %16 = vector.load %arg7[%c0_12, %c0_13] : memref<1x128xf32, #tpu.memory_space<vmem>>, vector<1x128xf32>
    %cst_14 = arith.constant dense<0.000000e+00> : vector<16x128xf32>
    %17 = tpu.matmul %14, %15, %cst_14 {dimension_numbers = #tpu.dot_dimension_numbers<[1], [0], [0], [1], [0, 0, 1, 1], [], []>} : vector<16x128xbf16>, vector<128x128xbf16>, vector<16x128xf32> -> vector<16x128xf32>
    %18 = vector.broadcast %16 : vector<1x128xf32> to vector<16x128xf32>
    %19 = arith.addf %17, %18 : vector<16x128xf32>
    %cst_15 = arith.constant 0.000000e+00 : f32
    %20 = vector.broadcast %cst_15 : f32 to vector<16x128xf32>
    %21 = arith.maximumf %19, %20 : vector<16x128xf32>
    %c0_16 = arith.constant 0 : index
    %c0_17 = arith.constant 0 : index
    %22 = vector.load %arg8[%c0_16, %c0_17] : memref<1x128xf32, #tpu.memory_space<vmem>>, vector<1x128xf32>
    %23 = vector.broadcast %22 : vector<1x128xf32> to vector<16x128xf32>
    %24 = arith.mulf %21, %23 : vector<16x128xf32>
    %c0_18 = arith.constant 0 : index
    %c0_19 = arith.constant 0 : index
    %25 = vector.load %arg9[%c0_18, %c0_19] : memref<1x128xf32, #tpu.memory_space<vmem>>, vector<1x128xf32>
    %26 = vector.broadcast %25 : vector<1x128xf32> to vector<16x128xf32>
    %27 = arith.addf %24, %26 : vector<16x128xf32>
    %28 = arith.truncf %27 : vector<16x128xf32> to vector<16x128xbf16>
    %c0_20 = arith.constant 0 : index
    %c0_21 = arith.constant 0 : index
    %29 = vector.load %arg10[%c0_20, %c0_21] : memref<128x128xbf16, #tpu.memory_space<vmem>>, vector<128x128xbf16>
    %c0_22 = arith.constant 0 : index
    %c0_23 = arith.constant 0 : index
    %30 = vector.load %arg11[%c0_22, %c0_23] : memref<1x128xf32, #tpu.memory_space<vmem>>, vector<1x128xf32>
    %cst_24 = arith.constant dense<0.000000e+00> : vector<16x128xf32>
    %31 = tpu.matmul %28, %29, %cst_24 {dimension_numbers = #tpu.dot_dimension_numbers<[1], [0], [0], [1], [0, 0, 1, 1], [], []>} : vector<16x128xbf16>, vector<128x128xbf16>, vector<16x128xf32> -> vector<16x128xf32>
    %32 = vector.broadcast %30 : vector<1x128xf32> to vector<16x128xf32>
    %33 = arith.addf %31, %32 : vector<16x128xf32>
    %34 = tpu.iota {dimensions = array<i32: 1>} : vector<16x128xi32>
    %c8_i32 = arith.constant 8 : i32
    %35 = vector.broadcast %c8_i32 : i32 to vector<16x128xi32>
    %36 = arith.cmpi slt, %34, %35 : vector<16x128xi32>
    %cst_25 = arith.constant -1.000000e+30 : f32
    %37 = vector.broadcast %cst_25 : f32 to vector<16x128xf32>
    %38 = arith.select %36, %33, %37 : vector<16x128xi1>, vector<16x128xf32>
    %cst_26 = arith.constant dense<0xFF800000> : vector<16xf32>
    %39 = vector.multi_reduction <maximumf>, %38, %cst_26 [1] : vector<16x128xf32> to vector<16xf32>
    %40 = vector.shape_cast %39 : vector<16xf32> to vector<16x1xf32>
    %41 = vector.broadcast %40 : vector<16x1xf32> to vector<16x128xf32>
    %42 = arith.subf %38, %41 : vector<16x128xf32>
    %43 = math.exp %42 : vector<16x128xf32>
    %cst_27 = arith.constant dense<0.000000e+00> : vector<16xf32>
    %44 = vector.multi_reduction <add>, %43, %cst_27 [1] : vector<16x128xf32> to vector<16xf32>
    %45 = vector.shape_cast %44 : vector<16xf32> to vector<16x1xf32>
    %46 = math.log %45 : vector<16x1xf32>
    %47 = vector.broadcast %46 : vector<16x1xf32> to vector<16x128xf32>
    %48 = arith.subf %42, %47 : vector<16x128xf32>
    %c0_28 = arith.constant 0 : index
    %c0_29 = arith.constant 0 : index
    %49 = vector.load %arg12[%c0_28, %c0_29] : memref<16x128xf32, #tpu.memory_space<vmem>>, vector<16x128xf32>
    tpu.vector_store %arg12[%c0_28, %c0_29], %48 {strides = array<i32>} : memref<16x128xf32, #tpu.memory_space<vmem>>, vector<16x128xf32>,
    return
  }
  func.func @transform_0(%arg0: i32) -> (i32, i32) {
    %c0_i32 = arith.constant 0 : i32
    %c0_i32_0 = arith.constant 0 : i32
    return %arg0, %c0_i32 : i32, i32
  }
  func.func @transform_1(%arg0: i32) -> (i32, i32) {
    %c0_i32 = arith.constant 0 : i32
    %c0_i32_0 = arith.constant 0 : i32
    %c0_i32_1 = arith.constant 0 : i32
    return %c0_i32, %c0_i32_0 : i32, i32
  }
  func.func @transform_2(%arg0: i32) -> (i32, i32) {
    %c0_i32 = arith.constant 0 : i32
    %c0_i32_0 = arith.constant 0 : i32
    %c0_i32_1 = arith.constant 0 : i32
    return %c0_i32, %c0_i32_0 : i32, i32
  }
  func.func @transform_3(%arg0: i32) -> (i32, i32) {
    %c0_i32 = arith.constant 0 : i32
    %c0_i32_0 = arith.constant 0 : i32
    %c0_i32_1 = arith.constant 0 : i32
    return %c0_i32, %c0_i32_0 : i32, i32
  }
  func.func @transform_4(%arg0: i32) -> (i32, i32) {
    %c0_i32 = arith.constant 0 : i32
    %c0_i32_0 = arith.constant 0 : i32
    %c0_i32_1 = arith.constant 0 : i32
    return %c0_i32, %c0_i32_0 : i32, i32
  }
  func.func @transform_5(%arg0: i32) -> (i32, i32) {
    %c0_i32 = arith.constant 0 : i32
    %c0_i32_0 = arith.constant 0 : i32
    %c0_i32_1 = arith.constant 0 : i32
    return %c0_i32, %c0_i32_0 : i32, i32
  }
  func.func @transform_6(%arg0: i32) -> (i32, i32) {
    %c0_i32 = arith.constant 0 : i32
    %c0_i32_0 = arith.constant 0 : i32
    %c0_i32_1 = arith.constant 0 : i32
    return %c0_i32, %c0_i32_0 : i32, i32
  }
  func.func @transform_7(%arg0: i32) -> (i32, i32) {
    %c0_i32 = arith.constant 0 : i32
    %c0_i32_0 = arith.constant 0 : i32
    %c0_i32_1 = arith.constant 0 : i32
    return %c0_i32, %c0_i32_0 : i32, i32
  }
  func.func @transform_8(%arg0: i32) -> (i32, i32) {
    %c0_i32 = arith.constant 0 : i32
    %c0_i32_0 = arith.constant 0 : i32
    %c0_i32_1 = arith.constant 0 : i32
    return %c0_i32, %c0_i32_0 : i32, i32
  }
  func.func @transform_9(%arg0: i32) -> (i32, i32) {
    %c0_i32 = arith.constant 0 : i32
    %c0_i32_0 = arith.constant 0 : i32
    %c0_i32_1 = arith.constant 0 : i32
    return %c0_i32, %c0_i32_0 : i32, i32
  }
  func.func @transform_10(%arg0: i32) -> (i32, i32) {
    %c0_i32 = arith.constant 0 : i32
    %c0_i32_0 = arith.constant 0 : i32
    %c0_i32_1 = arith.constant 0 : i32
    return %c0_i32, %c0_i32_0 : i32, i32
  }
  func.func @transform_11(%arg0: i32) -> (i32, i32) {
    %c0_i32 = arith.constant 0 : i32
    %c0_i32_0 = arith.constant 0 : i32
    return %arg0, %c0_i32 : i32, i32
  }
}

</mosaic_0001>

<llo_original>
// kernel: tpu_custom_call.1
$region0: #{tpu_custom_call.1}
  #allocation0 [shape = 'u32[]', space=smem, size = 0x4, offset = 0x4, fixed_abs, tag = 'smem constant byte address 0x4 - core index']
  #allocation1 [shape = 'u32[144,128]{1,0:T(1,128)}', space=vmem, size = 0x12000, scoped, tag = 'internal scratch']
  %s0 = inlined_call_operand.hbm [shape: bf16[16,128], index: 0, kind: input, shape index: {}]
  %s1 = inlined_call_operand.hbm [shape: bf16[128,128], index: 1, kind: input, shape index: {}]
  %s2 = inlined_call_operand.vmem [shape: f32[1,128], index: 2, kind: input, shape index: {}]
  %s3 = inlined_call_operand.vmem [shape: f32[1,128], index: 3, kind: input, shape index: {}]
  %s4 = inlined_call_operand.vmem [shape: f32[1,128], index: 4, kind: input, shape index: {}]
  %s5 = inlined_call_operand.hbm [shape: bf16[128,128], index: 5, kind: input, shape index: {}]
  %s6 = inlined_call_operand.vmem [shape: f32[1,128], index: 6, kind: input, shape index: {}]
  %s7 = inlined_call_operand.vmem [shape: f32[1,128], index: 7, kind: input, shape index: {}]
  %s8 = inlined_call_operand.vmem [shape: f32[1,128], index: 8, kind: input, shape index: {}]
  %s9 = inlined_call_operand.hbm [shape: bf16[128,128], index: 9, kind: input, shape index: {}]
  %s10 = inlined_call_operand.vmem [shape: f32[1,128], index: 10, kind: input, shape index: {}]
  %s11 = inlined_call_operand.hbm [shape: f32[16,128], index: 11, kind: output, shape index: {}]
  %s12 = sld [smem:[#allocation0]]
  $region70: #{tpu_custom_call.1} parent=0
    _
  %s14 = ssub.s32 1, %s12
  %s15 = scalar_select 0, %s14, %s12
  $region1: #{tpu_custom_call.1} parent=0
    #allocation2 [shape = 'u8[4096]{0}', space=vmem, size = 0x1000, scoped, tag = 'input window, operand 0, single buffered']
    #allocation3 [shape = 's32[1]{0}', space=sflag, size = 0x4, scoped, tag = 'scoped memory for tpu_custom_call.1']
    #allocation4 [shape = 's32[1]{0}', space=sflag, size = 0x4, scoped, tag = 'scoped memory for tpu_custom_call.1']
    #allocation5 [shape = 'u8[32768]{0}', space=vmem, size = 0x8000, scoped, tag = 'input window, operand 1, single buffered']
    #allocation6 [shape = 's32[1]{0}', space=sflag, size = 0x4, scoped, tag = 'scoped memory for tpu_custom_call.1']
    #allocation7 [shape = 'u8[32768]{0}', space=vmem, size = 0x8000, scoped, tag = 'input window, operand 5, single buffered']
    #allocation8 [shape = 'u8[32768]{0}', space=vmem, size = 0x8000, scoped, tag = 'input window, operand 9, single buffered']
    #allocation9 [shape = 's32[1]{0}', space=sflag, size = 0x4, scoped, tag = 'scoped memory for tpu_custom_call.1']
    #allocation10 [shape = 'u8[8192]{0}', space=vmem, size = 0x2000, scoped, tag = 'output window, operand 0, single buffered']
    %16 = vsyncpa [#allocation3], 0
    %17 = vsyncpa [#allocation6], 0
    %18 = vsyncpa [#allocation9], 0
    %19 = vsyncpa [#allocation4], 0
    // Predicated region
    $region2: #{tpu_custom_call.1} parent=1 // pred_check
      _
    $region3: #{tpu_custom_call.1} parent=1 // pred_check_branch
      %21 = sbr.rel (0) target = $region5
    $region4: #{tpu_custom_call.1} parent=1 // pred_region
      %s23 = ssub.s32 128, 128
      %24 = vsyncadd [#allocation3], %s23
      %s25 = sshll.u32 [#allocation2], 4
      %s26 = int_to_ptr.vmem [resolvable:$true] %s25
      %31 = dma.hbm_to_vmem [thread:$0]  %s0, 128, %s26, [#allocation3], 64, 64, 4
    $region5: #{tpu_custom_call.1} parent=1 // pred_fallthru
      _
    // Predicated region
    $region6: #{tpu_custom_call.1} parent=1 // pred_check
      _
    $region7: #{tpu_custom_call.1} parent=1 // pred_check_branch
      %33 = sbr.rel (0) target = $region9
    $region8: #{tpu_custom_call.1} parent=1 // pred_region
      %s35 = ssub.s32 1024, 1024
      %36 = vsyncadd [#allocation6], %s35
      %s37 = sshll.u32 [#allocation5], 4
      %s38 = int_to_ptr.vmem [resolvable:$true] %s37
      %43 = dma.hbm_to_vmem [thread:$0]  %s1, 1024, %s38, [#allocation6], 64, 64, 4
    $region9: #{tpu_custom_call.1} parent=1 // pred_fallthru
      _
    // Predicated region
    $region10: #{tpu_custom_call.1} parent=1 // pred_check
      _
    $region11: #{tpu_custom_call.1} parent=1 // pred_check_branch
      %45 = sbr.rel (0) target = $region13
    $region12: #{tpu_custom_call.1} parent=1 // pred_region
      _
    $region13: #{tpu_custom_call.1} parent=1 // pred_fallthru
      _
    // Predicated region
    $region14: #{tpu_custom_call.1} parent=1 // pred_check
      _
    $region15: #{tpu_custom_call.1} parent=1 // pred_check_branch
      %47 = sbr.rel (0) target = $region17
    $region16: #{tpu_custom_call.1} parent=1 // pred_region
      _
    $region17: #{tpu_custom_call.1} parent=1 // pred_fallthru
      _
    // Predicated region
    $region18: #{tpu_custom_call.1} parent=1 // pred_check
      _
    $region19: #{tpu_custom_call.1} parent=1 // pred_check_branch
      %49 = sbr.rel (0) target = $region21
    $region20: #{tpu_custom_call.1} parent=1 // pred_region
      _
    $region21: #{tpu_custom_call.1} parent=1 // pred_fallthru
      _
    // Predicated region
    $region22: #{tpu_custom_call.1} parent=1 // pred_check
      _
    $region23: #{tpu_custom_call.1} parent=1 // pred_check_branch
      %51 = sbr.rel (0) target = $region25
    $region24: #{tpu_custom_call.1} parent=1 // pred_region
      %s53 = ssub.s32 1024, 1024
      %54 = vsyncadd [#allocation6], %s53
      %s55 = sshll.u32 [#allocation7], 4
      %s56 = int_to_ptr.vmem [resolvable:$true] %s55
      %61 = dma.hbm_to_vmem [thread:$0]  %s5, 1024, %s56, [#allocation6], 64, 64, 4
    $region25: #{tpu_custom_call.1} parent=1 // pred_fallthru
      _
    // Predicated region
    $region26: #{tpu_custom_call.1} parent=1 // pred_check
      _
    $region27: #{tpu_custom_call.1} parent=1 // pred_check_branch
      %63 = sbr.rel (0) target = $region29
    $region28: #{tpu_custom_call.1} parent=1 // pred_region
      _
    $region29: #{tpu_custom_call.1} parent=1 // pred_fallthru
      _
    // Predicated region
    $region30: #{tpu_custom_call.1} parent=1 // pred_check
      _
    $region31: #{tpu_custom_call.1} parent=1 // pred_check_branch
      %65 = sbr.rel (0) target = $region33
    $region32: #{tpu_custom_call.1} parent=1 // pred_region
      _
    $region33: #{tpu_custom_call.1} parent=1 // pred_fallthru
      _
    // Predicated region
    $region34: #{tpu_custom_call.1} parent=1 // pred_check
      _
    $region35: #{tpu_custom_call.1} parent=1 // pred_check_branch
      %67 = sbr.rel (0) target = $region37
    $region36: #{tpu_custom_call.1} parent=1 // pred_region
      _
    $region37: #{tpu_custom_call.1} parent=1 // pred_fallthru
      _
    // Predicated region
    $region38: #{tpu_custom_call.1} parent=1 // pred_check
      _
    $region39: #{tpu_custom_call.1} parent=1 // pred_check_branch
      %69 = sbr.rel (0) target = $region41
    $region40: #{tpu_custom_call.1} parent=1 // pred_region
      %s71 = ssub.s32 1024, 1024
      %72 = vsyncadd [#allocation9], %s71
      %s73 = sshll.u32 [#allocation8], 4
      %s74 = int_to_ptr.vmem [resolvable:$true] %s73
      %79 = dma.hbm_to_vmem [thread:$0]  %s9, 1024, %s74, [#allocation9], 64, 64, 4
    $region41: #{tpu_custom_call.1} parent=1 // pred_fallthru
      _
    // Predicated region
    $region42: #{tpu_custom_call.1} parent=1 // pred_check
      _
    $region43: #{tpu_custom_call.1} parent=1 // pred_check_branch
      %81 = sbr.rel (0) target = $region45
    $region44: #{tpu_custom_call.1} parent=1 // pred_region
      _
    $region45: #{tpu_custom_call.1} parent=1 // pred_fallthru
      _
    // Predicated region
    $region46: #{tpu_custom_call.1} parent=1 // pred_check
      _
    $region47: #{tpu_custom_call.1} parent=1 // pred_check_branch
      %83 = sbr.rel (0) target = $region49
    $region48: #{tpu_custom_call.1} parent=1 // pred_region
      %84 = dma.done [#allocation3], 128
    $region49: #{tpu_custom_call.1} parent=1 // pred_fallthru
      _
    // Predicated region
    $region50: #{tpu_custom_call.1} parent=1 // pred_check
      _
    $region51: #{tpu_custom_call.1} parent=1 // pred_check_branch
      %86 = sbr.rel (0) target = $region53
    $region52: #{tpu_custom_call.1} parent=1 // pred_region
      %87 = dma.done [#allocation6], 1024
    $region53: #{tpu_custom_call.1} parent=1 // pred_fallthru
      _
    // Predicated region
    $region54: #{tpu_custom_call.1} parent=1 // pred_check
      _
    $region55: #{tpu_custom_call.1} parent=1 // pred_check_branch
      %89 = sbr.rel (0) target = $region57
    $region56: #{tpu_custom_call.1} parent=1 // pred_region
      %90 = dma.done [#allocation6], 1024
    $region57: #{tpu_custom_call.1} parent=1 // pred_fallthru
      _
    // Predicated region
    $region58: #{tpu_custom_call.1} parent=1 // pred_check
      _
    $region59: #{tpu_custom_call.1} parent=1 // pred_check_branch
      %92 = sbr.rel (0) target = $region61
    $region60: #{tpu_custom_call.1} parent=1 // pred_region
      %93 = dma.done [#allocation9], 1024
    $region61: #{tpu_custom_call.1} parent=1 // pred_fallthru
      _
    %v95 = vld [vmem:[#allocation2] sm:$0xf]
    %v96 = vld [vmem:[#allocation2 + $0x4] sm:$0xf]
    %v97 = vld [vmem:[#allocation5] sm:$0xf]
    %v98 = vld [vmem:[#allocation5 + $0x4] sm:$0xf]
    %v99 = vld [vmem:[#allocation5 + $0x8] sm:$0xf]
    %v100 = vld [vmem:[#allocation5 + $0xc] sm:$0xf]
    %v101 = vld [vmem:[#allocation5 + $0x10] sm:$0xf]
    %v102 = vld [vmem:[#allocation5 + $0x14] sm:$0xf]
    %v103 = vld [vmem:[#allocation5 + $0x18] sm:$0xf]
    %v104 = vld [vmem:[#allocation5 + $0x1c] sm:$0xf]
    %v105 = vld [vmem:[#allocation5 + $0x20] sm:$0xf]
    %v106 = vld [vmem:[#allocation5 + $0x24] sm:$0xf]
    %v107 = vld [vmem:[#allocation5 + $0x28] sm:$0xf]
    %v108 = vld [vmem:[#allocation5 + $0x2c] sm:$0xf]
    %v109 = vld [vmem:[#allocation5 + $0x30] sm:$0xf]
    %v110 = vld [vmem:[#allocation5 + $0x34] sm:$0xf]
    %v111 = vld [vmem:[#allocation5 + $0x38] sm:$0xf]
    %v112 = vld [vmem:[#allocation5 + $0x3c] sm:$0xf]
    %v113 = vld [vmem:[%s2] sm:$0x1]
    %v115 = vlaneseq
    %v116 = vshrl.u32 %v115, 7
    %v117 = vsub.s32 0, %v116
    %v118 = vrot.slane %v113, %v117
    %v122 = vunpack.c.l.b16 %v95
    %v123 = vunpack.c.l.b16 %v96
    %v124 = vpack.c.b16 %v123, %v122
    %v142 = vunpack.c.l.b16 %v97
    %v143 = vunpack.c.l.b16 %v98
    %v144 = vunpack.c.l.b16 %v99
    %v145 = vunpack.c.l.b16 %v100
    %v146 = vunpack.c.l.b16 %v101
    %v147 = vunpack.c.l.b16 %v102
    %v148 = vunpack.c.l.b16 %v103
    %v149 = vunpack.c.l.b16 %v104
    %v150 = vunpack.c.l.b16 %v105
    %v151 = vunpack.c.l.b16 %v106
    %v152 = vunpack.c.l.b16 %v107
    %v153 = vunpack.c.l.b16 %v108
    %v154 = vunpack.c.l.b16 %v109
    %v155 = vunpack.c.l.b16 %v110
    %v156 = vunpack.c.l.b16 %v111
    %v157 = vunpack.c.l.b16 %v112
    %v158 = vpack.c.b16 %v143, %v142
    %v159 = vpack.c.b16 %v145, %v144
    %v160 = vpack.c.b16 %v147, %v146
    %v161 = vpack.c.b16 %v149, %v148
    %v162 = vpack.c.b16 %v151, %v150
    %v163 = vpack.c.b16 %v153, %v152
    %v164 = vpack.c.b16 %v155, %v154
    %v165 = vpack.c.b16 %v157, %v156
    %174 = vmatprep.subr.bf16.mxu0 0
    %175 = vmatpush1.bf16.msra.mxu0 %v158
    %176 = vmatprep.subr.bf16.mxu0 0
    %177 = vmatpush1.bf16.msra.mxu0 %v159
    %178 = vmatprep.subr.bf16.mxu0 0
    %179 = vmatpush1.bf16.msra.mxu0 %v160
    %180 = vmatprep.subr.bf16.mxu0 0
    %181 = vmatpush1.bf16.msra.mxu0 %v161
    %182 = vmatprep.subr.bf16.mxu0 0
    %183 = vmatpush1.bf16.msra.mxu0 %v162
    %184 = vmatprep.subr.bf16.mxu0 0
    %185 = vmatpush1.bf16.msra.mxu0 %v163
    %186 = vmatprep.subr.bf16.mxu0 0
    %187 = vmatpush1.bf16.msra.mxu0 %v164
    %188 = vmatprep.subr.bf16.mxu0 0
    %189 = vmatpush1.bf16.msra.mxu0 %v165
    %190 = vmatprep.subr.bf16.mxu0 0
    %191 = vmatpush1.bf16.msra.mxu0 0
    %192 = vmatprep.subr.bf16.mxu0 0
    %193 = vmatpush1.bf16.msra.mxu0 0
    %194 = vmatprep.subr.bf16.mxu0 0
    %195 = vmatpush1.bf16.msra.mxu0 0
    %196 = vmatprep.subr.bf16.mxu0 0
    %197 = vmatpush1.bf16.msra.mxu0 0
    %198 = vmatprep.subr.bf16.mxu0 0
    %199 = vmatpush1.bf16.msra.mxu0 0
    %200 = vmatprep.subr.bf16.mxu0 0
    %201 = vmatpush1.bf16.msra.mxu0 0
    %202 = vmatprep.subr.bf16.mxu0 0
    %203 = vmatpush1.bf16.msra.mxu0 0
    %204 = vmatprep.subr.bf16.mxu0 0
    %205 = vmatpush1.bf16.msra.mxu0 0
    %206 = vmatprep.mubr.bf16.mxu0 0
    %207 = vmatmul.mubr.bf16.gmra.mrb[0].mxu0 %v124
    %v208 = vpop.f32.mrb[0].mxu0
    %v209 = vadd.f32 %v118, %v208
    %v210 = vpop.f32.mrb[0].mxu0
    %v211 = vpop.f32.mrb[0].mxu0
    %v212 = vadd.f32 %v118, %v211
    %v213 = vpop.f32.mrb[0].mxu0
    %214 = vdwg.mxu0
    %v215 = vmax.f32 %v209, 0.0
    %v216 = vmax.f32 %v212, 0.0
    %v217 = vld [vmem:[%s3] sm:$0x1]
    %v219 = vlaneseq
    %v220 = vshrl.u32 %v219, 7
    %v221 = vsub.s32 0, %v220
    %v222 = vrot.slane %v217, %v221
    %v224 = vmul.f32 %v215, %v222
    %v225 = vmul.f32 %v216, %v222
    %v226 = vld [vmem:[%s4] sm:$0x1]
    %v228 = vlaneseq
    %v229 = vshrl.u32 %v228, 7
    %v230 = vsub.s32 0, %v229
    %v231 = vrot.slane %v226, %v230
    %v233 = vadd.f32 %v224, %v231
    %v234 = vadd.f32 %v225, %v231
    %v235 = vpack.c.bf16 %v234, %v233
    %v236 = vld [vmem:[#allocation7] sm:$0xf]
    %v237 = vld [vmem:[#allocation7 + $0x4] sm:$0xf]
    %v238 = vld [vmem:[#allocation7 + $0x8] sm:$0xf]
    %v239 = vld [vmem:[#allocation7 + $0xc] sm:$0xf]
    %v240 = vld [vmem:[#allocation7 + $0x10] sm:$0xf]
    %v241 = vld [vmem:[#allocation7 + $0x14] sm:$0xf]
    %v242 = vld [vmem:[#allocation7 + $0x18] sm:$0xf]
    %v243 = vld [vmem:[#allocation7 + $0x1c] sm:$0xf]
    %v244 = vld [vmem:[#allocation7 + $0x20] sm:$0xf]
    %v245 = vld [vmem:[#allocation7 + $0x24] sm:$0xf]
    %v246 = vld [vmem:[#allocation7 + $0x28] sm:$0xf]
    %v247 = vld [vmem:[#allocation7 + $0x2c] sm:$0xf]
    %v248 = vld [vmem:[#allocation7 + $0x30] sm:$0xf]
    %v249 = vld [vmem:[#allocation7 + $0x34] sm:$0xf]
    %v250 = vld [vmem:[#allocation7 + $0x38] sm:$0xf]
    %v251 = vld [vmem:[#allocation7 + $0x3c] sm:$0xf]
    %v252 = vld [vmem:[%s6] sm:$0x1]
    %v254 = vlaneseq
    %v255 = vshrl.u32 %v254, 7
    %v256 = vsub.s32 0, %v255
    %v257 = vrot.slane %v252, %v256
    %v275 = vunpack.c.l.b16 %v236
    %v276 = vunpack.c.l.b16 %v237
    %v277 = vunpack.c.l.b16 %v238
    %v278 = vunpack.c.l.b16 %v239
    %v279 = vunpack.c.l.b16 %v240
    %v280 = vunpack.c.l.b16 %v241
    %v281 = vunpack.c.l.b16 %v242
    %v282 = vunpack.c.l.b16 %v243
    %v283 = vunpack.c.l.b16 %v244
    %v284 = vunpack.c.l.b16 %v245
    %v285 = vunpack.c.l.b16 %v246
    %v286 = vunpack.c.l.b16 %v247
    %v287 = vunpack.c.l.b16 %v248
    %v288 = vunpack.c.l.b16 %v249
    %v289 = vunpack.c.l.b16 %v250
    %v290 = vunpack.c.l.b16 %v251
    %v291 = vpack.c.b16 %v276, %v275
    %v292 = vpack.c.b16 %v278, %v277
    %v293 = vpack.c.b16 %v280, %v279
    %v294 = vpack.c.b16 %v282, %v281
    %v295 = vpack.c.b16 %v284, %v283
    %v296 = vpack.c.b16 %v286, %v285
    %v297 = vpack.c.b16 %v288, %v287
    %v298 = vpack.c.b16 %v290, %v289
    %307 = vmatprep.subr.bf16.mxu0 0
    %308 = vmatpush1.bf16.msra.mxu0 %v291
    %309 = vmatprep.subr.bf16.mxu0 0
    %310 = vmatpush1.bf16.msra.mxu0 %v292
    %311 = vmatprep.subr.bf16.mxu0 0
    %312 = vmatpush1.bf16.msra.mxu0 %v293
    %313 = vmatprep.subr.bf16.mxu0 0
    %314 = vmatpush1.bf16.msra.mxu0 %v294
    %315 = vmatprep.subr.bf16.mxu0 0
    %316 = vmatpush1.bf16.msra.mxu0 %v295
    %317 = vmatprep.subr.bf16.mxu0 0
    %318 = vmatpush1.bf16.msra.mxu0 %v296
    %319 = vmatprep.subr.bf16.mxu0 0
    %320 = vmatpush1.bf16.msra.mxu0 %v297
    %321 = vmatprep.subr.bf16.mxu0 0
    %322 = vmatpush1.bf16.msra.mxu0 %v298
    %323 = vmatprep.subr.bf16.mxu0 0
    %324 = vmatpush1.bf16.msra.mxu0 0
    %325 = vmatprep.subr.bf16.mxu0 0
    %326 = vmatpush1.bf16.msra.mxu0 0
    %327 = vmatprep.subr.bf16.mxu0 0
    %328 = vmatpush1.bf16.msra.mxu0 0
    %329 = vmatprep.subr.bf16.mxu0 0
    %330 = vmatpush1.bf16.msra.mxu0 0
    %331 = vmatprep.subr.bf16.mxu0 0
    %332 = vmatpush1.bf16.msra.mxu0 0
    %333 = vmatprep.subr.bf16.mxu0 0
    %334 = vmatpush1.bf16.msra.mxu0 0
    %335 = vmatprep.subr.bf16.mxu0 0
    %336 = vmatpush1.bf16.msra.mxu0 0
    %337 = vmatprep.subr.bf16.mxu0 0
    %338 = vmatpush1.bf16.msra.mxu0 0
    %339 = vmatprep.mubr.bf16.mxu0 0
    %340 = vmatmul.mubr.bf16.gmra.mrb[0].mxu0 %v235
    %v341 = vpop.f32.mrb[0].mxu0
    %v342 = vadd.f32 %v257, %v341
    %v343 = vpop.f32.mrb[0].mxu0
    %v344 = vpop.f32.mrb[0].mxu0
    %v345 = vadd.f32 %v257, %v344
    %v346 = vpop.f32.mrb[0].mxu0
    %347 = vdwg.mxu0
    %v348 = vmax.f32 %v342, 0.0
    %v349 = vmax.f32 %v345, 0.0
    %v350 = vld [vmem:[%s7] sm:$0x1]
    %v352 = vlaneseq
    %v353 = vshrl.u32 %v352, 7
    %v354 = vsub.s32 0, %v353
    %v355 = vrot.slane %v350, %v354
    %v357 = vmul.f32 %v348, %v355
    %v358 = vmul.f32 %v349, %v355
    %v359 = vld [vmem:[%s8] sm:$0x1]
    %v361 = vlaneseq
    %v362 = vshrl.u32 %v361, 7
    %v363 = vsub.s32 0, %v362
    %v364 = vrot.slane %v359, %v363
    %v366 = vadd.f32 %v357, %v364
    %v367 = vadd.f32 %v358, %v364
    %v368 = vpack.c.bf16 %v367, %v366
    %v369 = vld [vmem:[#allocation8] sm:$0xf]
    %v370 = vld [vmem:[#allocation8 + $0x4] sm:$0xf]
    %v371 = vld [vmem:[#allocation8 + $0x8] sm:$0xf]
    %v372 = vld [vmem:[#allocation8 + $0xc] sm:$0xf]
    %v373 = vld [vmem:[#allocation8 + $0x10] sm:$0xf]
    %v374 = vld [vmem:[#allocation8 + $0x14] sm:$0xf]
    %v375 = vld [vmem:[#allocation8 + $0x18] sm:$0xf]
    %v376 = vld [vmem:[#allocation8 + $0x1c] sm:$0xf]
    %v377 = vld [vmem:[#allocation8 + $0x20] sm:$0xf]
    %v378 = vld [vmem:[#allocation8 + $0x24] sm:$0xf]
    %v379 = vld [vmem:[#allocation8 + $0x28] sm:$0xf]
    %v380 = vld [vmem:[#allocation8 + $0x2c] sm:$0xf]
    %v381 = vld [vmem:[#allocation8 + $0x30] sm:$0xf]
    %v382 = vld [vmem:[#allocation8 + $0x34] sm:$0xf]
    %v383 = vld [vmem:[#allocation8 + $0x38] sm:$0xf]
    %v384 = vld [vmem:[#allocation8 + $0x3c] sm:$0xf]
    %v385 = vld [vmem:[%s10] sm:$0x1]
    %v387 = vlaneseq
    %v388 = vshrl.u32 %v387, 7
    %v389 = vsub.s32 0, %v388
    %v390 = vrot.slane %v385, %v389
    %v408 = vunpack.c.l.b16 %v369
    %v409 = vunpack.c.l.b16 %v370
    %v410 = vunpack.c.l.b16 %v371
    %v411 = vunpack.c.l.b16 %v372
    %v412 = vunpack.c.l.b16 %v373
    %v413 = vunpack.c.l.b16 %v374
    %v414 = vunpack.c.l.b16 %v375
    %v415 = vunpack.c.l.b16 %v376
    %v416 = vunpack.c.l.b16 %v377
    %v417 = vunpack.c.l.b16 %v378
    %v418 = vunpack.c.l.b16 %v379
    %v419 = vunpack.c.l.b16 %v380
    %v420 = vunpack.c.l.b16 %v381
    %v421 = vunpack.c.l.b16 %v382
    %v422 = vunpack.c.l.b16 %v383
    %v423 = vunpack.c.l.b16 %v384
    %v424 = vpack.c.b16 %v409, %v408
    %v425 = vpack.c.b16 %v411, %v410
    %v426 = vpack.c.b16 %v413, %v412
    %v427 = vpack.c.b16 %v415, %v414
    %v428 = vpack.c.b16 %v417, %v416
    %v429 = vpack.c.b16 %v419, %v418
    %v430 = vpack.c.b16 %v421, %v420
    %v431 = vpack.c.b16 %v423, %v422
    %440 = vmatprep.subr.bf16.mxu0 0
    %441 = vmatpush1.bf16.msra.mxu0 %v424
    %442 = vmatprep.subr.bf16.mxu0 0
    %443 = vmatpush1.bf16.msra.mxu0 %v425
    %444 = vmatprep.subr.bf16.mxu0 0
    %445 = vmatpush1.bf16.msra.mxu0 %v426
    %446 = vmatprep.subr.bf16.mxu0 0
    %447 = vmatpush1.bf16.msra.mxu0 %v427
    %448 = vmatprep.subr.bf16.mxu0 0
    %449 = vmatpush1.bf16.msra.mxu0 %v428
    %450 = vmatprep.subr.bf16.mxu0 0
    %451 = vmatpush1.bf16.msra.mxu0 %v429
    %452 = vmatprep.subr.bf16.mxu0 0
    %453 = vmatpush1.bf16.msra.mxu0 %v430
    %454 = vmatprep.subr.bf16.mxu0 0
    %455 = vmatpush1.bf16.msra.mxu0 %v431
    %456 = vmatprep.subr.bf16.mxu0 0
    %457 = vmatpush1.bf16.msra.mxu0 0
    %458 = vmatprep.subr.bf16.mxu0 0
    %459 = vmatpush1.bf16.msra.mxu0 0
    %460 = vmatprep.subr.bf16.mxu0 0
    %461 = vmatpush1.bf16.msra.mxu0 0
    %462 = vmatprep.subr.bf16.mxu0 0
    %463 = vmatpush1.bf16.msra.mxu0 0
    %464 = vmatprep.subr.bf16.mxu0 0
    %465 = vmatpush1.bf16.msra.mxu0 0
    %466 = vmatprep.subr.bf16.mxu0 0
    %467 = vmatpush1.bf16.msra.mxu0 0
    %468 = vmatprep.subr.bf16.mxu0 0
    %469 = vmatpush1.bf16.msra.mxu0 0
    %470 = vmatprep.subr.bf16.mxu0 0
    %471 = vmatpush1.bf16.msra.mxu0 0
    %472 = vmatprep.mubr.bf16.mxu0 0
    %473 = vmatmul.mubr.bf16.gmra.mrb[0].mxu0 %v368
    %v474 = vpop.f32.mrb[0].mxu0
    %v475 = vadd.f32 %v390, %v474
    %v476 = vpop.f32.mrb[0].mxu0
    %v477 = vpop.f32.mrb[0].mxu0
    %v478 = vadd.f32 %v390, %v477
    %v479 = vpop.f32.mrb[0].mxu0
    %480 = vdwg.mxu0
    %v481 = vlaneseq
    %v482 = vand.u32 %v481, 127
    %vm483 = vcmp.lt.s32.totalorder %v482, 8
    %v484 = vsel %vm483, %v475, -1e+30
    %v485 = vsel %vm483, %v478, -1e+30
    %486 = vmax.xlane.f32.xlu0 %v484
    %v487 = vpop.xlane.xlu0 %486
    %488 = vmax.xlane.f32.xlu0 %v485
    %v489 = vpop.xlane.xlu0 %488
    %v490 = vsub.f32 %v484, %v487
    %v491 = vsub.f32 %v485, %v489
    %v492 = vmul.f32 %v490, 1.442695
    %v493 = vpow.pop %v492
    %v494 = vmul.f32 %v491, 1.442695
    %v495 = vpow.pop %v494
    %496 = vadd.xlane.f32.xlu0 %v493
    %v497 = vpop.xlane.xlu0 %496
    %498 = vadd.xlane.f32.xlu0 %v495
    %v499 = vpop.xlane.xlu0 %498
    %v500 = vlog2.pop %v497
    %v501 = vmul.f32 %v500, 0.6931472
    %v502 = vlog2.pop %v499
    %v503 = vmul.f32 %v502, 0.6931472
    %v504 = vsub.f32 %v490, %v501
    %v505 = vsub.f32 %v491, %v503
    %506 = vst [vmem:[#allocation10] sm:$0xff] %v504
    %507 = vst [vmem:[#allocation10 + $0x8] sm:$0xff] %v505
    // Predicated region
    $region62: #{tpu_custom_call.1} parent=1 // pred_check
      _
    $region63: #{tpu_custom_call.1} parent=1 // pred_check_branch
      %509 = sbr.rel (0) target = $region65
    $region64: #{tpu_custom_call.1} parent=1 // pred_region
      %s511 = ssub.s32 256, 256
      %512 = vsyncadd [#allocation4], %s511
      %s513 = sshll.u32 [#allocation10], 4
      %s514 = int_to_ptr.vmem [resolvable:$true] %s513
      %519 = dma.vmem_to_hbm [thread:$0]  %s514, 256, %s11, [#allocation4], 128, 128, 8
    $region65: #{tpu_custom_call.1} parent=1 // pred_fallthru
      _
    // Predicated region
    $region66: #{tpu_custom_call.1} parent=1 // pred_check
      _
    $region67: #{tpu_custom_call.1} parent=1 // pred_check_branch
      %521 = sbr.rel (0) target = $region69
    $region68: #{tpu_custom_call.1} parent=1 // pred_region
      %522 = dma.done [#allocation4], 256
    $region69: #{tpu_custom_call.1} parent=1 // pred_fallthru
      _
    %523 = vsyncpa [#allocation3], 1
    %524 = vsyncpa [#allocation6], 1
    %525 = vsyncpa [#allocation9], 1
    %526 = vsyncpa [#allocation4], 1

</llo_original>
